<compile_context>
chip_gen: v5e
topology: v5e:2x2
jax: 0.10.0
libtpu: 0.0.40
codegen_flags: <defaults>
</compile_context>

<pallas_src>
import functools

import jax
import jax.numpy as jnp
from jax.experimental import pallas as pl
from jax.experimental.pallas import tpu as pltpu


def _cdiv(a, b):
    return -(-a // b)


def _round_up(n, m):
    return ((n + m - 1) // m) * m


def mlp_kernel(x_ref, w1_ref, b1_ref, w2_ref, b2_ref, o_ref):
    # x_ref : (TR, 128) f32  -- 8 batch rows packed per lane-row (zero-copy view)
    # w1_ref: (128, 64) bf16 -- block-diagonal Linear(16,8), VMEM-resident
    # b1_ref: (1, 64)   f32
    # w2_ref: (64, 32)  bf16 -- block-diagonal Linear(8,4), VMEM-resident
    # b2_ref: (1, 32)   f32
    # o_ref : (TR, 32)  f32
    x = x_ref[...]
    # bf16 operands for the MXU (accumulation stays f32); bias adds + tanh in f32.
    h = jnp.dot(x.astype(jnp.bfloat16), w1_ref[...],
                preferred_element_type=jnp.float32) + b1_ref[...]   # (TR, 64)
    h = jnp.tanh(h)                                                  # EUP, f32
    o = jnp.dot(h.astype(jnp.bfloat16), w2_ref[...],
                preferred_element_type=jnp.float32) + b2_ref[...]   # (TR, 32)
    # TODO(synk): QuantStub/DeQuantStub are identity in the eager (unconverted)
    # model; a converted quantized model would need scale/zero-point handling.
    o_ref[...] = o.astype(o_ref.dtype)


@functools.partial(jax.jit, static_argnames=("row_tile",))
def quantized_mlp_forward(x, w1, b1, w2, b2, *, row_tile=2048):
    """x: (B, 16) f32; w1: (8, 16); b1: (8,); w2: (4, 8); b2: (4,) -> (B, 4)."""
    B, in_f = x.shape            # in_f = 16
    hid_f = w1.shape[0]          # 8
    out_f = w2.shape[0]          # 4
    pack = 128 // in_f           # 8 batch rows per 128-lane row

    # ----- grid / tile selection -------------------------------------------
    rows = _cdiv(B, pack)
    # Prefer >= 2 balanced grid steps (v7x megacore) while capping the tile;
    # always a multiple of 8 sublanes (defensive vs. arbitrary row_tile).
    tr = min(int(row_tile), _round_up(_cdiv(rows, 2), 8))
    tr = _round_up(max(tr, 1), 8)
    rows_pad = _round_up(rows, tr)
    grid = (rows_pad // tr,)
    b_pad = rows_pad * pack

    # ----- zero-copy packed input (no transpose) ---------------------------
    xf = jnp.asarray(x, jnp.float32)
    if b_pad != B:                                   # pad only when needed
        xf = jnp.pad(xf, ((0, b_pad - B), (0, 0)))
    x_packed = xf.reshape(rows_pad, pack * in_f)     # (rows_pad, 128), row-major view

    # ----- block-diagonal "effective" weights (tiny, built once per call) --
    w1f = jnp.asarray(w1, jnp.float32)               # (8, 16)
    w2f = jnp.asarray(w2, jnp.float32)               # (4, 8)
    eye = jnp.eye(pack, dtype=jnp.float32)
    # W1eff[16a+f, 8b+j] = [a==b] * W1[j, f]   -> (128, 64)
    w1eff = jnp.einsum("ab,jf->afbj", eye, w1f).reshape(
        pack * in_f, pack * hid_f).astype(jnp.bfloat16)
    # W2eff[8a+j, 4b+k] = [a==b] * W2[k, j]    -> (64, 32)
    w2eff = jnp.einsum("ab,kj->ajbk", eye, w2f).reshape(
        pack * hid_f, pack * out_f).astype(jnp.bfloat16)
    b1eff = jnp.tile(jnp.asarray(b1, jnp.float32), pack).reshape(1, pack * hid_f)
    b2eff = jnp.tile(jnp.asarray(b2, jnp.float32), pack).reshape(1, pack * out_f)

    o_packed = pl.pallas_call(
        mlp_kernel,
        out_shape=jax.ShapeDtypeStruct((rows_pad, pack * out_f), jnp.float32),
        grid=grid,
        in_specs=[
            pl.BlockSpec((tr, pack * in_f), lambda i: (i, 0)),        # x tile
            pl.BlockSpec((pack * in_f, pack * hid_f), lambda i: (0, 0)),   # W1eff
            pl.BlockSpec((1, pack * hid_f), lambda i: (0, 0)),             # b1eff
            pl.BlockSpec((pack * hid_f, pack * out_f), lambda i: (0, 0)),  # W2eff
            pl.BlockSpec((1, pack * out_f), lambda i: (0, 0)),             # b2eff
        ],
        out_specs=pl.BlockSpec((tr, pack * out_f), lambda i: (i, 0)),
        compiler_params=pltpu.CompilerParams(
            dimension_semantics=("parallel",),       # split batch tiles across TCs
            vmem_limit_bytes=32 * 1024 * 1024,
        ),
    )(x_packed, w1eff, b1eff, w2eff, b2eff)

    # (rows_pad, 32) -> (b_pad, 4) with no data movement; drop padded rows.
    out = o_packed.reshape(b_pad, out_f)
    if b_pad != B:
        out = out[:B]
    return out


def _torch_like_linear_init(key, out_features, in_features):
    """Deterministic nn.Linear-style init: U(-1/sqrt(fan_in), 1/sqrt(fan_in))."""
    kw, kb = jax.random.split(key)
    bound = 1.0 / jnp.sqrt(jnp.float32(in_features))
    w = jax.random.uniform(kw, (out_features, in_features),
                           jnp.float32, -bound, bound)
    b = jax.random.uniform(kb, (out_features,), jnp.float32, -bound, bound)
    return w, b


def _reference(x, w1, b1, w2, b2):
    return jnp.tanh(x @ w1.T + b1) @ w2.T + b2


if __name__ == "__main__":
    key = jax.random.PRNGKey(0)
    kx, kxb, k1, k2 = jax.random.split(key, 4)

    w1, b1 = _torch_like_linear_init(k1, 8, 16)   # Linear(16, 8)
    w2, b2 = _torch_like_linear_init(k2, 4, 8)    # Linear(8, 4)

    # bf16 MXU operands (f32 accumulation) -> loosened tolerance vs f32 reference.
    TOL = dict(atol=2e-2, rtol=2e-2)

    # 1) Module-annotated shape: [1, 16] float32 (padding path, grid of 1).
    x1 = jax.random.normal(kx, (1, 16), jnp.float32)
    out1 = jax.block_until_ready(quantized_mlp_forward(x1, w1, b1, w2, b2))
    assert out1.shape == (1, 4)
    assert jnp.allclose(out1, _reference(x1, w1, b1, w2, b2), **TOL)

    # 2) Batched case exercising padding + a multi-step grid (rows=38 -> 3 tiles).
    xb = jax.random.normal(kxb, (300, 16), jnp.float32)
    outb = jax.block_until_ready(
        quantized_mlp_forward(xb, w1, b1, w2, b2, row_tile=16))
    assert outb.shape == (300, 4)
    assert jnp.allclose(outb, _reference(xb, w1, b1, w2, b2), **TOL)

    # 3) Aligned batch (no padding, default big tile, balanced 2-step grid).
    xc = jax.random.normal(kx, (1024, 16), jnp.float32)
    outc = jax.block_until_ready(quantized_mlp_forward(xc, w1, b1, w2, b2))
    assert outc.shape == (1024, 4)
    assert jnp.allclose(outc, _reference(xc, w1, b1, w2, b2), **TOL)

    print("KERNEL_OK")
</pallas_src>

<mosaic_0001>
module attributes {stable_mosaic.version = 11 : i64} {
  func.func @mlp_kernel(%arg0: i32, %arg1: memref<8x128xf32, #tpu.memory_space<vmem>>, %arg2: memref<128x64xbf16, #tpu.memory_space<vmem>>, %arg3: memref<1x64xf32, #tpu.memory_space<vmem>>, %arg4: memref<64x32xbf16, #tpu.memory_space<vmem>>, %arg5: memref<1x32xf32, #tpu.memory_space<vmem>>, %arg6: memref<8x32xf32, #tpu.memory_space<vmem>>) attributes {dimension_semantics = [#tpu.dimension_semantics<parallel>], iteration_bounds = array<i64: 1>, scalar_prefetch = 0 : i64, scratch_operands = 0 : i64, tpu.core_type = #tpu.core_type<tc>, window_params = [{transform_indices = @transform_0, window_bounds = array<i64: 8, 128>}, {pipeline_mode = #tpu.pipeline_mode<synchronous>, transform_indices = @transform_1, window_bounds = array<i64: 128, 64>}, {pipeline_mode = #tpu.pipeline_mode<synchronous>, transform_indices = @transform_2, window_bounds = array<i64: 1, 64>}, {pipeline_mode = #tpu.pipeline_mode<synchronous>, transform_indices = @transform_3, window_bounds = array<i64: 64, 32>}, {pipeline_mode = #tpu.pipeline_mode<synchronous>, transform_indices = @transform_4, window_bounds = array<i64: 1, 32>}, {transform_indices = @transform_5, window_bounds = array<i64: 8, 32>}]} {
    %c0 = arith.constant 0 : index
    %c0_0 = arith.constant 0 : index
    %0 = vector.load %arg1[%c0, %c0_0] : memref<8x128xf32, #tpu.memory_space<vmem>>, vector<8x128xf32>
    %1 = arith.truncf %0 : vector<8x128xf32> to vector<8x128xbf16>
    %c0_1 = arith.constant 0 : index
    %c0_2 = arith.constant 0 : index
    %2 = vector.load %arg2[%c0_1, %c0_2] : memref<128x64xbf16, #tpu.memory_space<vmem>>, vector<128x64xbf16>
    %cst = arith.constant dense<0.000000e+00> : vector<8x64xf32>
    %3 = tpu.matmul %1, %2, %cst {dimension_numbers = #tpu.dot_dimension_numbers<[1], [0], [0], [1], [0, 0, 1, 1], [], []>} : vector<8x128xbf16>, vector<128x64xbf16>, vector<8x64xf32> -> vector<8x64xf32>
    %c0_3 = arith.constant 0 : index
    %c0_4 = arith.constant 0 : index
    %4 = vector.load %arg3[%c0_3, %c0_4] : memref<1x64xf32, #tpu.memory_space<vmem>>, vector<1x64xf32>
    %5 = vector.broadcast %4 : vector<1x64xf32> to vector<8x64xf32>
    %6 = arith.addf %3, %5 : vector<8x64xf32>
    %7 = math.tanh %6 : vector<8x64xf32>
    %8 = arith.truncf %7 : vector<8x64xf32> to vector<8x64xbf16>
    %c0_5 = arith.constant 0 : index
    %c0_6 = arith.constant 0 : index
    %9 = vector.load %arg4[%c0_5, %c0_6] : memref<64x32xbf16, #tpu.memory_space<vmem>>, vector<64x32xbf16>
    %cst_7 = arith.constant dense<0.000000e+00> : vector<8x32xf32>
    %10 = tpu.matmul %8, %9, %cst_7 {dimension_numbers = #tpu.dot_dimension_numbers<[1], [0], [0], [1], [0, 0, 1, 1], [], []>} : vector<8x64xbf16>, vector<64x32xbf16>, vector<8x32xf32> -> vector<8x32xf32>
    %c0_8 = arith.constant 0 : index
    %c0_9 = arith.constant 0 : index
    %11 = vector.load %arg5[%c0_8, %c0_9] : memref<1x32xf32, #tpu.memory_space<vmem>>, vector<1x32xf32>
    %12 = vector.broadcast %11 : vector<1x32xf32> to vector<8x32xf32>
    %13 = arith.addf %10, %12 : vector<8x32xf32>
    %c0_10 = arith.constant 0 : index
    %c0_11 = arith.constant 0 : index
    %14 = vector.load %arg6[%c0_10, %c0_11] : memref<8x32xf32, #tpu.memory_space<vmem>>, vector<8x32xf32>
    tpu.vector_store %arg6[%c0_10, %c0_11], %13 {strides = array<i32>} : memref<8x32xf32, #tpu.memory_space<vmem>>, vector<8x32xf32>,
    return
  }
  func.func @transform_0(%arg0: i32) -> (i32, i32) {
    %c0_i32 = arith.constant 0 : i32
    %c0_i32_0 = arith.constant 0 : i32
    return %arg0, %c0_i32 : i32, i32
  }
  func.func @transform_1(%arg0: i32) -> (i32, i32) {
    %c0_i32 = arith.constant 0 : i32
    %c0_i32_0 = arith.constant 0 : i32
    %c0_i32_1 = arith.constant 0 : i32
    return %c0_i32, %c0_i32_0 : i32, i32
  }
  func.func @transform_2(%arg0: i32) -> (i32, i32) {
    %c0_i32 = arith.constant 0 : i32
    %c0_i32_0 = arith.constant 0 : i32
    %c0_i32_1 = arith.constant 0 : i32
    return %c0_i32, %c0_i32_0 : i32, i32
  }
  func.func @transform_3(%arg0: i32) -> (i32, i32) {
    %c0_i32 = arith.constant 0 : i32
    %c0_i32_0 = arith.constant 0 : i32
    %c0_i32_1 = arith.constant 0 : i32
    return %c0_i32, %c0_i32_0 : i32, i32
  }
  func.func @transform_4(%arg0: i32) -> (i32, i32) {
    %c0_i32 = arith.constant 0 : i32
    %c0_i32_0 = arith.constant 0 : i32
    %c0_i32_1 = arith.constant 0 : i32
    return %c0_i32, %c0_i32_0 : i32, i32
  }
  func.func @transform_5(%arg0: i32) -> (i32, i32) {
    %c0_i32 = arith.constant 0 : i32
    %c0_i32_0 = arith.constant 0 : i32
    return %arg0, %c0_i32 : i32, i32
  }
}

</mosaic_0001>

<llo_original>
// kernel: tile.13
$region0: #{tile.13}
  #allocation0 [shape = 's32[1]{0}', space=sflag, size = 0x4, scoped, tag = 'scoped memory for tile.13']
  %s0 = inlined_call_operand.vmem [shape: f32[8], index: 0, kind: input, shape index: {}]
  %s1 = inlined_call_operand.vmem [shape: f32[8,8], index: 1, kind: output, shape index: {}]
  // Predicated region
  $region2: #{tile.13} parent=0 // pred_check
    _
  $region3: #{tile.13} parent=0 // pred_check_branch
    %3 = sbr.rel (0) target = $region5
  $region4: #{tile.13} parent=0 // pred_region
    _
  $region5: #{tile.13} parent=0 // pred_fallthru
    _
  %v4 = vld [vmem:[%s0] ss:$0 sm:$0xff]
  %5 = vst [vmem:[%s1] sm:$0xff] %v4

// kernel: tile.14
$region0: #{tile.14}
  %s0 = inlined_call_operand.vmem [shape: f32[8,8], index: 0, kind: input, shape index: {}]
  %s1 = inlined_call_operand.vmem [shape: f32[1,64], index: 1, kind: output, shape index: {}]
  $region1: #{tile.14} parent=0
    #allocation0 [shape = 'u8[4096]{0}', space=vmem, size = 0x1000, scoped, tag = 'scoped mem for output reshape']
    %v2 = vld [vmem:[%s0] sm:$0x1]
    %vm3 = vcmask 64512
    %4 = vst.msk [vmem:[#allocation0] sm:$0x1] %vm3, %v2
    %s5 = scalar_lea.vmem %s0, 7
    %v6 = vld [vmem:[%s5] sm:$0x1]
    %7 = vrot.lane.b32.xlu0 %v6, 56
    %v8 = vpop.permute.xlu0 %7
    %vm9 = vcmask 523712
    %10 = vst.msk [vmem:[#allocation0] sm:$0x1] %vm9, %v8
    %s11 = scalar_lea.vmem %s0, 6
    %v12 = vld [vmem:[%s11] sm:$0x1]
    %13 = vrot.lane.b32.xlu0 %v12, 48
    %v14 = vpop.permute.xlu0 %13
    %vm15 = vcmask 458112
    %16 = vst.msk [vmem:[#allocation0] sm:$0x1] %vm15, %v14
    %s17 = scalar_lea.vmem %s0, 5
    %v18 = vld [vmem:[%s17] sm:$0x1]
    %19 = vrot.lane.b32.xlu0 %v18, 40
    %v20 = vpop.permute.xlu0 %19
    %vm21 = vcmask 392512
    %22 = vst.msk [vmem:[#allocation0] sm:$0x1] %vm21, %v20
    %s23 = scalar_lea.vmem %s0, 4
    %v24 = vld [vmem:[%s23] sm:$0x1]
    %25 = vrot.lane.b32.xlu0 %v24, 32
    %v26 = vpop.permute.xlu0 %25
    %vm27 = vcmask 326912
    %28 = vst.msk [vmem:[#allocation0] sm:$0x1] %vm27, %v26
    %s29 = scalar_lea.vmem %s0, 3
    %v30 = vld [vmem:[%s29] sm:$0x1]
    %31 = vrot.lane.b32.xlu0 %v30, 24
    %v32 = vpop.permute.xlu0 %31
    %vm33 = vcmask 261312
    %34 = vst.msk [vmem:[#allocation0] sm:$0x1] %vm33, %v32
    %s35 = scalar_lea.vmem %s0, 2
    %v36 = vld [vmem:[%s35] sm:$0x1]
    %37 = vrot.lane.b32.xlu0 %v36, 16
    %v38 = vpop.permute.xlu0 %37
    %vm39 = vcmask 195712
    %40 = vst.msk [vmem:[#allocation0] sm:$0x1] %vm39, %v38
    %s41 = scalar_lea.vmem %s0, 1
    %v42 = vld [vmem:[%s41] sm:$0x1]
    %43 = vrot.lane.b32.xlu0 %v42, 8
    %v44 = vpop.permute.xlu0 %43
    %vm45 = vcmask 130112
    %46 = vst.msk [vmem:[#allocation0] sm:$0x1] %vm45, %v44
    %s48 = ssub.s32 2, 1
    %v49 = vld [vmem:[#allocation0] sm:%s48]
    %s51 = ssub.s32 2, 1
    %52 = vst [vmem:[%s1] sm:%s51] %v49

// kernel: tile.18
$region0: #{tile.18}
  #allocation0 [shape = 's32[1]{0}', space=sflag, size = 0x4, scoped, tag = 'scoped memory for tile.18']
  %s0 = inlined_call_operand.vmem [shape: f32[4], index: 0, kind: input, shape index: {}]
  %s1 = inlined_call_operand.vmem [shape: f32[8,4], index: 1, kind: output, shape index: {}]
  // Predicated region
  $region2: #{tile.18} parent=0 // pred_check
    _
  $region3: #{tile.18} parent=0 // pred_check_branch
    %3 = sbr.rel (0) target = $region5
  $region4: #{tile.18} parent=0 // pred_region
    _
  $region5: #{tile.18} parent=0 // pred_fallthru
    _
  %v4 = vld [vmem:[%s0] ss:$0 sm:$0xff]
  %5 = vst [vmem:[%s1] sm:$0xff] %v4

// kernel: tile.19
$region0: #{tile.19}
  %s0 = inlined_call_operand.vmem [shape: f32[8,4], index: 0, kind: input, shape index: {}]
  %s1 = inlined_call_operand.vmem [shape: f32[1,32], index: 1, kind: output, shape index: {}]
  $region1: #{tile.19} parent=0
    #allocation0 [shape = 'u8[4096]{0}', space=vmem, size = 0x1000, scoped, tag = 'scoped mem for output reshape']
    %v2 = vld [vmem:[%s0] sm:$0x1]
    %vm3 = vcmask 31744
    %4 = vst.msk [vmem:[#allocation0] sm:$0x1] %vm3, %v2
    %s5 = scalar_lea.vmem %s0, 7
    %v6 = vld [vmem:[%s5] sm:$0x1]
    %7 = vrot.lane.b32.xlu0 %v6, 28
    %v8 = vpop.permute.xlu0 %7
    %vm9 = vcmask 261344
    %10 = vst.msk [vmem:[#allocation0] sm:$0x1] %vm9, %v8
    %s11 = scalar_lea.vmem %s0, 6
    %v12 = vld [vmem:[%s11] sm:$0x1]
    %13 = vrot.lane.b32.xlu0 %v12, 24
    %v14 = vpop.permute.xlu0 %13
    %vm15 = vcmask 228544
    %16 = vst.msk [vmem:[#allocation0] sm:$0x1] %vm15, %v14
    %s17 = scalar_lea.vmem %s0, 5
    %v18 = vld [vmem:[%s17] sm:$0x1]
    %19 = vrot.lane.b32.xlu0 %v18, 20
    %v20 = vpop.permute.xlu0 %19
    %vm21 = vcmask 195744
    %22 = vst.msk [vmem:[#allocation0] sm:$0x1] %vm21, %v20
    %s23 = scalar_lea.vmem %s0, 4
    %v24 = vld [vmem:[%s23] sm:$0x1]
    %25 = vrot.lane.b32.xlu0 %v24, 16
    %v26 = vpop.permute.xlu0 %25
    %vm27 = vcmask 162944
    %28 = vst.msk [vmem:[#allocation0] sm:$0x1] %vm27, %v26
    %s29 = scalar_lea.vmem %s0, 3
    %v30 = vld [vmem:[%s29] sm:$0x1]
    %31 = vrot.lane.b32.xlu0 %v30, 12
    %v32 = vpop.permute.xlu0 %31
    %vm33 = vcmask 130144
    %34 = vst.msk [vmem:[#allocation0] sm:$0x1] %vm33, %v32
    %s35 = scalar_lea.vmem %s0, 2
    %v36 = vld [vmem:[%s35] sm:$0x1]
    %37 = vrot.lane.b32.xlu0 %v36, 8
    %v38 = vpop.permute.xlu0 %37
    %vm39 = vcmask 97344
    %40 = vst.msk [vmem:[#allocation0] sm:$0x1] %vm39, %v38
    %s41 = scalar_lea.vmem %s0, 1
    %v42 = vld [vmem:[%s41] sm:$0x1]
    %43 = vrot.lane.b32.xlu0 %v42, 4
    %v44 = vpop.permute.xlu0 %43
    %vm45 = vcmask 64544
    %46 = vst.msk [vmem:[#allocation0] sm:$0x1] %vm45, %v44
    %s48 = ssub.s32 2, 1
    %v49 = vld [vmem:[#allocation0] sm:%s48]
    %s51 = ssub.s32 2, 1
    %52 = vst [vmem:[%s1] sm:%s51] %v49

// kernel: quantized_mlp_forward.1
$region0: #{quantized_mlp_forward.1}
  #allocation0 [shape = 'u32[]', space=smem, size = 0x4, offset = 0x4, fixed_abs, tag = 'smem constant byte address 0x4 - core index']
  #allocation1 [shape = 'u32[72,128]{1,0:T(1,128)}', space=vmem, size = 0x9000, scoped, tag = 'internal scratch']
  %s0 = inlined_call_operand.vmem [shape: f32[8,128], index: 0, kind: input, shape index: {}]
  %s1 = inlined_call_operand.vmem [shape: bf16[128,64], index: 1, kind: input, shape index: {}]
  %s2 = inlined_call_operand.vmem [shape: f32[1,64], index: 2, kind: input, shape index: {}]
  %s3 = inlined_call_operand.vmem [shape: bf16[64,32], index: 3, kind: input, shape index: {}]
  %s4 = inlined_call_operand.vmem [shape: f32[1,32], index: 4, kind: input, shape index: {}]
  %s5 = inlined_call_operand.vmem [shape: f32[8,32], index: 5, kind: output, shape index: {}]
  %s6 = sld [smem:[#allocation0]]
  $region30: #{quantized_mlp_forward.1} parent=0
    _
  %s8 = ssub.s32 1, %s6
  %s9 = scalar_select 0, %s8, %s6
  // Predicated region
  $region2: #{quantized_mlp_forward.1} parent=0 // pred_check
    _
  $region3: #{quantized_mlp_forward.1} parent=0 // pred_check_branch
    %11 = sbr.rel (0) target = $region5
  $region4: #{quantized_mlp_forward.1} parent=0 // pred_region
    _
  $region5: #{quantized_mlp_forward.1} parent=0 // pred_fallthru
    _
  // Predicated region
  $region6: #{quantized_mlp_forward.1} parent=0 // pred_check
    _
  $region7: #{quantized_mlp_forward.1} parent=0 // pred_check_branch
    %13 = sbr.rel (0) target = $region9
  $region8: #{quantized_mlp_forward.1} parent=0 // pred_region
    _
  $region9: #{quantized_mlp_forward.1} parent=0 // pred_fallthru
    _
  // Predicated region
  $region10: #{quantized_mlp_forward.1} parent=0 // pred_check
    _
  $region11: #{quantized_mlp_forward.1} parent=0 // pred_check_branch
    %15 = sbr.rel (0) target = $region13
  $region12: #{quantized_mlp_forward.1} parent=0 // pred_region
    _
  $region13: #{quantized_mlp_forward.1} parent=0 // pred_fallthru
    _
  // Predicated region
  $region14: #{quantized_mlp_forward.1} parent=0 // pred_check
    _
  $region15: #{quantized_mlp_forward.1} parent=0 // pred_check_branch
    %17 = sbr.rel (0) target = $region17
  $region16: #{quantized_mlp_forward.1} parent=0 // pred_region
    _
  $region17: #{quantized_mlp_forward.1} parent=0 // pred_fallthru
    _
  // Predicated region
  $region18: #{quantized_mlp_forward.1} parent=0 // pred_check
    _
  $region19: #{quantized_mlp_forward.1} parent=0 // pred_check_branch
    %19 = sbr.rel (0) target = $region21
  $region20: #{quantized_mlp_forward.1} parent=0 // pred_region
    _
  $region21: #{quantized_mlp_forward.1} parent=0 // pred_fallthru
    _
  %v21 = vld [vmem:[%s0] sm:$0xff]
  %v22 = vpack.c.bf16 %v21, %v21
  %v23 = vld [vmem:[%s1] sm:$0xf]
  %v24 = vld [vmem:[%s1 + $0x4] sm:$0xf]
  %v25 = vld [vmem:[%s1 + $0x8] sm:$0xf]
  %v26 = vld [vmem:[%s1 + $0xc] sm:$0xf]
  %v27 = vld [vmem:[%s1 + $0x10] sm:$0xf]
  %v28 = vld [vmem:[%s1 + $0x14] sm:$0xf]
  %v29 = vld [vmem:[%s1 + $0x18] sm:$0xf]
  %v30 = vld [vmem:[%s1 + $0x1c] sm:$0xf]
  %v31 = vld [vmem:[%s1 + $0x20] sm:$0xf]
  %v32 = vld [vmem:[%s1 + $0x24] sm:$0xf]
  %v33 = vld [vmem:[%s1 + $0x28] sm:$0xf]
  %v34 = vld [vmem:[%s1 + $0x2c] sm:$0xf]
  %v35 = vld [vmem:[%s1 + $0x30] sm:$0xf]
  %v36 = vld [vmem:[%s1 + $0x34] sm:$0xf]
  %v37 = vld [vmem:[%s1 + $0x38] sm:$0xf]
  %v38 = vld [vmem:[%s1 + $0x3c] sm:$0xf]
  %v39 = vld [vmem:[%s2] sm:$0x1]
  %v41 = vperm.slane %v39, 0
  %v59 = vunpack.c.l.b16 %v23
  %v60 = vunpack.c.l.b16 %v24
  %v61 = vunpack.c.l.b16 %v25
  %v62 = vunpack.c.l.b16 %v26
  %v63 = vunpack.c.l.b16 %v27
  %v64 = vunpack.c.l.b16 %v28
  %v65 = vunpack.c.l.b16 %v29
  %v66 = vunpack.c.l.b16 %v30
  %v67 = vunpack.c.l.b16 %v31
  %v68 = vunpack.c.l.b16 %v32
  %v69 = vunpack.c.l.b16 %v33
  %v70 = vunpack.c.l.b16 %v34
  %v71 = vunpack.c.l.b16 %v35
  %v72 = vunpack.c.l.b16 %v36
  %v73 = vunpack.c.l.b16 %v37
  %v74 = vunpack.c.l.b16 %v38
  %v75 = vpack.c.b16 %v60, %v59
  %v76 = vpack.c.b16 %v62, %v61
  %v77 = vpack.c.b16 %v64, %v63
  %v78 = vpack.c.b16 %v66, %v65
  %v79 = vpack.c.b16 %v68, %v67
  %v80 = vpack.c.b16 %v70, %v69
  %v81 = vpack.c.b16 %v72, %v71
  %v82 = vpack.c.b16 %v74, %v73
  %91 = vmatpush.bf16.msra.mxu0 %v82
  %92 = vmatpush.bf16.msra.mxu0 %v81
  %93 = vmatpush.bf16.msra.mxu0 %v80
  %94 = vmatpush.bf16.msra.mxu0 %v79
  %95 = vmatpush.bf16.msra.mxu0 %v78
  %96 = vmatpush.bf16.msra.mxu0 %v77
  %97 = vmatpush.bf16.msra.mxu0 %v76
  %98 = vmatpush.bf16.msra.mxu0 %v75
  %99 = vmatmul.bf16.gmra.mxu0 %v22
  %v100 = vpop.f32.mrf.mxu0
  %v101 = vadd.f32 %v41, %v100
  %v102 = vpop.f32.mrf.mxu0
  %103 = vdwg.mxu0
  %v104 = vtanh.pop %v101
  %v105 = vpack.c.bf16 %v104, %v104
  %v106 = vld [vmem:[%s3] sm:$0xf]
  %v107 = vld [vmem:[%s3 + $0x4] sm:$0xf]
  %v108 = vld [vmem:[%s3 + $0x8] sm:$0xf]
  %v109 = vld [vmem:[%s3 + $0xc] sm:$0xf]
  %v110 = vld [vmem:[%s3 + $0x10] sm:$0xf]
  %v111 = vld [vmem:[%s3 + $0x14] sm:$0xf]
  %v112 = vld [vmem:[%s3 + $0x18] sm:$0xf]
  %v113 = vld [vmem:[%s3 + $0x1c] sm:$0xf]
  %v114 = vld [vmem:[%s4] sm:$0x1]
  %v116 = vperm.slane %v114, 0
  %v126 = vunpack.c.l.b16 %v106
  %v127 = vunpack.c.l.b16 %v107
  %v128 = vunpack.c.l.b16 %v108
  %v129 = vunpack.c.l.b16 %v109
  %v130 = vunpack.c.l.b16 %v110
  %v131 = vunpack.c.l.b16 %v111
  %v132 = vunpack.c.l.b16 %v112
  %v133 = vunpack.c.l.b16 %v113
  %v134 = vpack.c.b16 %v127, %v126
  %v135 = vpack.c.b16 %v129, %v128
  %v136 = vpack.c.b16 %v131, %v130
  %v137 = vpack.c.b16 %v133, %v132
  %vm142 = vcmask 523264
  %v144 = vsel %vm142, %v105, 0
  %146 = vmatpush.bf16.msra.mxu0 0
  %147 = vmatpush.bf16.msra.mxu0 0
  %148 = vmatpush.bf16.msra.mxu0 0
  %149 = vmatpush.bf16.msra.mxu0 0
  %150 = vmatpush.bf16.msra.mxu0 %v137
  %151 = vmatpush.bf16.msra.mxu0 %v136
  %152 = vmatpush.bf16.msra.mxu0 %v135
  %153 = vmatpush.bf16.msra.mxu0 %v134
  %154 = vmatmul.bf16.gmra.mxu0 %v144
  %v155 = vpop.f32.mrf.mxu0
  %v156 = vadd.f32 %v116, %v155
  %v157 = vpop.f32.mrf.mxu0
  %158 = vdwg.mxu0
  %vm159 = vcmask 261120
  %160 = vst.msk [vmem:[%s5] sm:$0xff] %vm159, %v156
  // Predicated region
  $region22: #{quantized_mlp_forward.1} parent=0 // pred_check
    _
  $region23: #{quantized_mlp_forward.1} parent=0 // pred_check_branch
    %162 = sbr.rel (0) target = $region25
  $region24: #{quantized_mlp_forward.1} parent=0 // pred_region
    _
  $region25: #{quantized_mlp_forward.1} parent=0 // pred_fallthru
    _
  // Predicated region
  $region26: #{quantized_mlp_forward.1} parent=0 // pred_check
    _
  $region27: #{quantized_mlp_forward.1} parent=0 // pred_check_branch
    %164 = sbr.rel (0) target = $region29
  $region28: #{quantized_mlp_forward.1} parent=0 // pred_region
    _
  $region29: #{quantized_mlp_forward.1} parent=0 // pred_fallthru
    _

</llo_original>
